<compile_context>
chip_gen: v6e
topology: v6e:2x2x1
jax: 0.10.0
libtpu: 0.0.40
codegen_flags: <defaults>
</compile_context>

<pallas_src>
import jax
import jax.numpy as jnp
from jax.experimental import pallas as pl
from jax.experimental.pallas import tpu as pltpu


def _upconv_relu_kernel(x_ref, w_ref, b_ref, o_ref):
    """One (batch item, TH-row) tile.

    x_ref : (Cin, TH, 2W)         lane-upsampled input rows (x_up[.., l] = x[.., l//2])
    w_ref : (2*Cin, Cout, 1, 2W)  w_ref[di*Cin+ci, co, 0, l] = weight[ci, co, di, l % 2]
    b_ref : (Cout, 1, 1)          bias
    o_ref : (Cout, TH, 4W)        output rows; column q = di*2W + 2j + dj
    """
    n_cin = x_ref.shape[0]
    w2 = x_ref.shape[-1]
    b = b_ref[...]                                   # (Cout, 1, 1)
    xs = [x_ref[c] for c in range(n_cin)]            # each (TH, 2W); reused for both di

    for di in range(2):
        # Fold bias into the first term (no zero-fill).  Broadcast shapes:
        #   (Cout, 1, 2W) * (TH, 2W) -> (Cout, TH, 2W)
        acc = w_ref[di * n_cin] * xs[0] + b
        for c in range(1, n_cin):
            acc = acc + w_ref[di * n_cin + c] * xs[c]
        o_ref[:, :, di * w2:(di + 1) * w2] = jnp.maximum(acc, 0.0).astype(o_ref.dtype)


def _pick_tile_rows(H, B, row_in_bytes, row_out_bytes, budget_bytes=10 * 1024 * 1024):
    """Rows of the input image per grid step.

    Must divide H and be a multiple of 8 (or equal H) for the (8,128) block rule.
    Sized so the double-buffered in+out blocks stay under ~10 MiB (headroom for
    v5e's 16 MiB scoped-VMEM default).  When B == 1, prefer >= 2 grid steps so
    v7x's two TensorCores both get work.
    """
    cands = [d for d in range(1, H + 1) if H % d == 0 and (d == H or d % 8 == 0)]
    per_step = 2 * (row_in_bytes + row_out_bytes)          # double-buffered in+out
    max_rows = max(1, budget_bytes // max(per_step, 1))
    ok = [d for d in cands if d <= max_rows]
    if not ok:
        return min(cands)          # pathological row size; fall back to smallest valid tile
    th = max(ok)
    if B == 1 and th == H:
        smaller = [d for d in ok if d < H]
        if smaller:
            th = max(smaller)      # guarantee grid >= 2 for megacore
    return th


def up_forward(x_nchw, weight, bias):
    """ConvTranspose2d(k=2, s=2) + ReLU.

    x_nchw : (B, Cin, H, W)        float32
    weight : (Cin, Cout, 2, 2)     float32   (PyTorch ConvTranspose2d layout)
    bias   : (Cout,)               float32
    returns: (B, Cout, 2H, 2W)     float32
    """
    B, Cin, H, W = x_nchw.shape
    Cout = weight.shape[1]
    W2, W4 = 2 * W, 4 * W

    # --- host-side prep (cheap, input-sized only; no pass over the output) ---
    # Lane upsample: x_up[b, ci, i, 2j+dj] = x[b, ci, i, j]
    x_up = jnp.repeat(x_nchw, 2, axis=-1)                                  # (B, Cin, H, 2W)
    # Lane-periodic weights: w_flat[di*Cin+ci, co, 0, l] = weight[ci, co, di, l % 2]
    w_perm = jnp.transpose(weight, (2, 0, 1, 3)).reshape(2 * Cin, Cout, 2)  # (di,ci)->rows
    w_flat = jnp.tile(w_perm, (1, 1, W)).reshape(2 * Cin, Cout, 1, W2)
    b3 = bias.reshape(Cout, 1, 1)

    row_in_bytes = Cin * W2 * 4
    row_out_bytes = Cout * W4 * 4
    TH = _pick_tile_rows(H, B, row_in_bytes, row_out_bytes)
    grid = (B, H // TH)

    cost = pl.CostEstimate(
        flops=2 * B * H * W * Cin * Cout * 4,
        transcendentals=0,
        bytes_accessed=4 * (B * Cin * H * W2 + 2 * Cin * Cout * W2 + Cout
                            + B * Cout * H * W4),
    )

    y = pl.pallas_call(
        _upconv_relu_kernel,
        out_shape=jax.ShapeDtypeStruct((B, Cout, H, W4), jnp.float32),
        grid_spec=pltpu.PrefetchScalarGridSpec(
            num_scalar_prefetch=0,
            grid=grid,
            in_specs=[
                # streamed input rows for batch item b, row-tile t
                pl.BlockSpec((None, Cin, TH, W2), lambda b, t: (b, 0, t, 0)),
                # resident expanded weights / bias (same block every step)
                pl.BlockSpec((2 * Cin, Cout, 1, W2), lambda b, t: (0, 0, 0, 0)),
                pl.BlockSpec((Cout, 1, 1), lambda b, t: (0, 0, 0)),
            ],
            out_specs=pl.BlockSpec((None, Cout, TH, W4), lambda b, t: (b, 0, t, 0)),
        ),
        compiler_params=pltpu.CompilerParams(
            dimension_semantics=("parallel", "parallel")),   # megacore split on v7x
        cost_estimate=cost,
    )(x_up, w_flat, b3)

    # (B, Cout, H, 4W) row-major is bit-identical to (B, Cout, 2H, 2W) NCHW:
    # column q = di*2W + 2j + dj  <->  output row 2i+di, column 2j+dj.
    # This reshape is a free bitcast (no HBM pass).
    return y.reshape(B, Cout, 2 * H, 2 * W)


def _reference(x_nchw, weight, bias):
    # Pure-JAX reference of the same math (no Pallas), for a sanity check.
    B, Cin, H, W = x_nchw.shape
    Cout = weight.shape[1]
    x_mat = jnp.transpose(x_nchw, (0, 2, 3, 1)).reshape(B * H * W, Cin)
    y = x_mat @ weight.reshape(Cin, Cout * 4) + jnp.repeat(bias, 4)[None, :]
    y = jnp.maximum(y, 0.0).reshape(B, H, W, Cout, 2, 2)
    return jnp.transpose(y, (0, 3, 1, 4, 2, 5)).reshape(B, Cout, 2 * H, 2 * W)


if __name__ == "__main__":
    key = jax.random.PRNGKey(0)
    k_x, k_w, k_b = jax.random.split(key, 3)

    B, in_ch, out_ch, H, W = 2, 4, 8, 16, 16

    x = jax.random.normal(k_x, (B, in_ch, H, W), dtype=jnp.float32)
    # PyTorch ConvTranspose2d weight shape: (in_ch, out_ch, kH, kW)
    weight = jax.random.normal(k_w, (in_ch, out_ch, 2, 2), dtype=jnp.float32) * 0.1
    bias = jax.random.normal(k_b, (out_ch,), dtype=jnp.float32) * 0.1

    out = jax.jit(up_forward)(x, weight, bias)
    jax.block_until_ready(out)

    ref = _reference(x, weight, bias)
    assert out.shape == (B, out_ch, 2 * H, 2 * W), out.shape
    assert jnp.allclose(out, ref, atol=1e-5, rtol=1e-5), float(
        jnp.max(jnp.abs(out - ref)))

    print("KERNEL_OK")
</pallas_src>

<mosaic_0001>
module attributes {stable_mosaic.version = 11 : i64} {
  func.func @_upconv_relu_kernel(%arg0: i32, %arg1: i32, %arg2: memref<1x4x16x32xf32, #tpu.memory_space<vmem>>, %arg3: memref<8x8x1x32xf32, #tpu.memory_space<vmem>>, %arg4: memref<8x1x1xf32, #tpu.memory_space<vmem>>, %arg5: memref<1x8x16x64xf32, #tpu.memory_space<vmem>>) attributes {dimension_semantics = [#tpu.dimension_semantics<parallel>, #tpu.dimension_semantics<parallel>], iteration_bounds = array<i64: 2, 1>, scalar_prefetch = 0 : i64, scratch_operands = 0 : i64, tpu.core_type = #tpu.core_type<tc>, window_params = [{transform_indices = @transform_0, window_bounds = array<i64: 1, 4, 16, 32>}, {pipeline_mode = #tpu.pipeline_mode<synchronous>, transform_indices = @transform_1, window_bounds = array<i64: 8, 8, 1, 32>}, {pipeline_mode = #tpu.pipeline_mode<synchronous>, transform_indices = @transform_2, window_bounds = array<i64: 8, 1, 1>}, {transform_indices = @transform_3, window_bounds = array<i64: 1, 8, 16, 64>}]} {
    %c0 = arith.constant 0 : index
    %c0_0 = arith.constant 0 : index
    %c0_1 = arith.constant 0 : index
    %0 = vector.load %arg4[%c0, %c0_0, %c0_1] : memref<8x1x1xf32, #tpu.memory_space<vmem>>, vector<8x1x1xf32>
    %c0_2 = arith.constant 0 : index
    %c0_3 = arith.constant 0 : index
    %c0_4 = arith.constant 0 : index
    %c0_5 = arith.constant 0 : index
    %1 = vector.load %arg2[%c0_2, %c0_3, %c0_4, %c0_5] : memref<1x4x16x32xf32, #tpu.memory_space<vmem>>, vector<1x1x16x32xf32>
    %2 = vector.shape_cast %1 : vector<1x1x16x32xf32> to vector<16x32xf32>
    %c0_6 = arith.constant 0 : index
    %c1 = arith.constant 1 : index
    %c0_7 = arith.constant 0 : index
    %c0_8 = arith.constant 0 : index
    %3 = vector.load %arg2[%c0_6, %c1, %c0_7, %c0_8] : memref<1x4x16x32xf32, #tpu.memory_space<vmem>>, vector<1x1x16x32xf32>
    %4 = vector.shape_cast %3 : vector<1x1x16x32xf32> to vector<16x32xf32>
    %c0_9 = arith.constant 0 : index
    %c2 = arith.constant 2 : index
    %c0_10 = arith.constant 0 : index
    %c0_11 = arith.constant 0 : index
    %5 = vector.load %arg2[%c0_9, %c2, %c0_10, %c0_11] : memref<1x4x16x32xf32, #tpu.memory_space<vmem>>, vector<1x1x16x32xf32>
    %6 = vector.shape_cast %5 : vector<1x1x16x32xf32> to vector<16x32xf32>
    %c0_12 = arith.constant 0 : index
    %c3 = arith.constant 3 : index
    %c0_13 = arith.constant 0 : index
    %c0_14 = arith.constant 0 : index
    %7 = vector.load %arg2[%c0_12, %c3, %c0_13, %c0_14] : memref<1x4x16x32xf32, #tpu.memory_space<vmem>>, vector<1x1x16x32xf32>
    %8 = vector.shape_cast %7 : vector<1x1x16x32xf32> to vector<16x32xf32>
    %c0_15 = arith.constant 0 : index
    %c0_16 = arith.constant 0 : index
    %c0_17 = arith.constant 0 : index
    %c0_18 = arith.constant 0 : index
    %9 = vector.load %arg3[%c0_15, %c0_16, %c0_17, %c0_18] : memref<8x8x1x32xf32, #tpu.memory_space<vmem>>, vector<1x8x1x32xf32>
    %10 = vector.shape_cast %9 : vector<1x8x1x32xf32> to vector<8x1x32xf32>
    %11 = vector.shape_cast %2 : vector<16x32xf32> to vector<1x16x32xf32>
    %12 = vector.broadcast %10 : vector<8x1x32xf32> to vector<8x16x32xf32>
    %13 = vector.broadcast %11 : vector<1x16x32xf32> to vector<8x16x32xf32>
    %14 = arith.mulf %12, %13 : vector<8x16x32xf32>
    %15 = vector.broadcast %0 : vector<8x1x1xf32> to vector<8x16x32xf32>
    %16 = arith.addf %14, %15 : vector<8x16x32xf32>
    %c1_19 = arith.constant 1 : index
    %c0_20 = arith.constant 0 : index
    %c0_21 = arith.constant 0 : index
    %c0_22 = arith.constant 0 : index
    %17 = vector.load %arg3[%c1_19, %c0_20, %c0_21, %c0_22] : memref<8x8x1x32xf32, #tpu.memory_space<vmem>>, vector<1x8x1x32xf32>
    %18 = vector.shape_cast %17 : vector<1x8x1x32xf32> to vector<8x1x32xf32>
    %19 = vector.shape_cast %4 : vector<16x32xf32> to vector<1x16x32xf32>
    %20 = vector.broadcast %18 : vector<8x1x32xf32> to vector<8x16x32xf32>
    %21 = vector.broadcast %19 : vector<1x16x32xf32> to vector<8x16x32xf32>
    %22 = arith.mulf %20, %21 : vector<8x16x32xf32>
    %23 = arith.addf %16, %22 : vector<8x16x32xf32>
    %c2_23 = arith.constant 2 : index
    %c0_24 = arith.constant 0 : index
    %c0_25 = arith.constant 0 : index
    %c0_26 = arith.constant 0 : index
    %24 = vector.load %arg3[%c2_23, %c0_24, %c0_25, %c0_26] : memref<8x8x1x32xf32, #tpu.memory_space<vmem>>, vector<1x8x1x32xf32>
    %25 = vector.shape_cast %24 : vector<1x8x1x32xf32> to vector<8x1x32xf32>
    %26 = vector.shape_cast %6 : vector<16x32xf32> to vector<1x16x32xf32>
    %27 = vector.broadcast %25 : vector<8x1x32xf32> to vector<8x16x32xf32>
    %28 = vector.broadcast %26 : vector<1x16x32xf32> to vector<8x16x32xf32>
    %29 = arith.mulf %27, %28 : vector<8x16x32xf32>
    %30 = arith.addf %23, %29 : vector<8x16x32xf32>
    %c3_27 = arith.constant 3 : index
    %c0_28 = arith.constant 0 : index
    %c0_29 = arith.constant 0 : index
    %c0_30 = arith.constant 0 : index
    %31 = vector.load %arg3[%c3_27, %c0_28, %c0_29, %c0_30] : memref<8x8x1x32xf32, #tpu.memory_space<vmem>>, vector<1x8x1x32xf32>
    %32 = vector.shape_cast %31 : vector<1x8x1x32xf32> to vector<8x1x32xf32>
    %33 = vector.shape_cast %8 : vector<16x32xf32> to vector<1x16x32xf32>
    %34 = vector.broadcast %32 : vector<8x1x32xf32> to vector<8x16x32xf32>
    %35 = vector.broadcast %33 : vector<1x16x32xf32> to vector<8x16x32xf32>
    %36 = arith.mulf %34, %35 : vector<8x16x32xf32>
    %37 = arith.addf %30, %36 : vector<8x16x32xf32>
    %cst = arith.constant 0.000000e+00 : f32
    %38 = vector.broadcast %cst : f32 to vector<8x16x32xf32>
    %39 = arith.maximumf %37, %38 : vector<8x16x32xf32>
    %c0_31 = arith.constant 0 : index
    %c0_32 = arith.constant 0 : index
    %c0_33 = arith.constant 0 : index
    %c0_34 = arith.constant 0 : index
    %40 = vector.load %arg5[%c0_31, %c0_32, %c0_33, %c0_34] : memref<1x8x16x64xf32, #tpu.memory_space<vmem>>, vector<1x8x16x32xf32>
    %41 = vector.shape_cast %40 : vector<1x8x16x32xf32> to vector<8x16x32xf32>
    %42 = vector.shape_cast %39 : vector<8x16x32xf32> to vector<1x8x16x32xf32>
    tpu.vector_store %arg5[%c0_31, %c0_32, %c0_33, %c0_34], %42 {strides = array<i32>} : memref<1x8x16x64xf32, #tpu.memory_space<vmem>>, vector<1x8x16x32xf32>,
    %c4 = arith.constant 4 : index
    %c0_35 = arith.constant 0 : index
    %c0_36 = arith.constant 0 : index
    %c0_37 = arith.constant 0 : index
    %43 = vector.load %arg3[%c4, %c0_35, %c0_36, %c0_37] : memref<8x8x1x32xf32, #tpu.memory_space<vmem>>, vector<1x8x1x32xf32>
    %44 = vector.shape_cast %43 : vector<1x8x1x32xf32> to vector<8x1x32xf32>
    %45 = vector.shape_cast %2 : vector<16x32xf32> to vector<1x16x32xf32>
    %46 = vector.broadcast %44 : vector<8x1x32xf32> to vector<8x16x32xf32>
    %47 = vector.broadcast %45 : vector<1x16x32xf32> to vector<8x16x32xf32>
    %48 = arith.mulf %46, %47 : vector<8x16x32xf32>
    %49 = vector.broadcast %0 : vector<8x1x1xf32> to vector<8x16x32xf32>
    %50 = arith.addf %48, %49 : vector<8x16x32xf32>
    %c5 = arith.constant 5 : index
    %c0_38 = arith.constant 0 : index
    %c0_39 = arith.constant 0 : index
    %c0_40 = arith.constant 0 : index
    %51 = vector.load %arg3[%c5, %c0_38, %c0_39, %c0_40] : memref<8x8x1x32xf32, #tpu.memory_space<vmem>>, vector<1x8x1x32xf32>
    %52 = vector.shape_cast %51 : vector<1x8x1x32xf32> to vector<8x1x32xf32>
    %53 = vector.shape_cast %4 : vector<16x32xf32> to vector<1x16x32xf32>
    %54 = vector.broadcast %52 : vector<8x1x32xf32> to vector<8x16x32xf32>
    %55 = vector.broadcast %53 : vector<1x16x32xf32> to vector<8x16x32xf32>
    %56 = arith.mulf %54, %55 : vector<8x16x32xf32>
    %57 = arith.addf %50, %56 : vector<8x16x32xf32>
    %c6 = arith.constant 6 : index
    %c0_41 = arith.constant 0 : index
    %c0_42 = arith.constant 0 : index
    %c0_43 = arith.constant 0 : index
    %58 = vector.load %arg3[%c6, %c0_41, %c0_42, %c0_43] : memref<8x8x1x32xf32, #tpu.memory_space<vmem>>, vector<1x8x1x32xf32>
    %59 = vector.shape_cast %58 : vector<1x8x1x32xf32> to vector<8x1x32xf32>
    %60 = vector.shape_cast %6 : vector<16x32xf32> to vector<1x16x32xf32>
    %61 = vector.broadcast %59 : vector<8x1x32xf32> to vector<8x16x32xf32>
    %62 = vector.broadcast %60 : vector<1x16x32xf32> to vector<8x16x32xf32>
    %63 = arith.mulf %61, %62 : vector<8x16x32xf32>
    %64 = arith.addf %57, %63 : vector<8x16x32xf32>
    %c7 = arith.constant 7 : index
    %c0_44 = arith.constant 0 : index
    %c0_45 = arith.constant 0 : index
    %c0_46 = arith.constant 0 : index
    %65 = vector.load %arg3[%c7, %c0_44, %c0_45, %c0_46] : memref<8x8x1x32xf32, #tpu.memory_space<vmem>>, vector<1x8x1x32xf32>
    %66 = vector.shape_cast %65 : vector<1x8x1x32xf32> to vector<8x1x32xf32>
    %67 = vector.shape_cast %8 : vector<16x32xf32> to vector<1x16x32xf32>
    %68 = vector.broadcast %66 : vector<8x1x32xf32> to vector<8x16x32xf32>
    %69 = vector.broadcast %67 : vector<1x16x32xf32> to vector<8x16x32xf32>
    %70 = arith.mulf %68, %69 : vector<8x16x32xf32>
    %71 = arith.addf %64, %70 : vector<8x16x32xf32>
    %cst_47 = arith.constant 0.000000e+00 : f32
    %72 = vector.broadcast %cst_47 : f32 to vector<8x16x32xf32>
    %73 = arith.maximumf %71, %72 : vector<8x16x32xf32>
    %c0_48 = arith.constant 0 : index
    %c0_49 = arith.constant 0 : index
    %c0_50 = arith.constant 0 : index
    %c32 = arith.constant 32 : index
    %74 = vector.load %arg5[%c0_48, %c0_49, %c0_50, %c32] : memref<1x8x16x64xf32, #tpu.memory_space<vmem>>, vector<1x8x16x32xf32>
    %75 = vector.shape_cast %74 : vector<1x8x16x32xf32> to vector<8x16x32xf32>
    %76 = vector.shape_cast %73 : vector<8x16x32xf32> to vector<1x8x16x32xf32>
    tpu.vector_store %arg5[%c0_48, %c0_49, %c0_50, %c32], %76 {strides = array<i32>} : memref<1x8x16x64xf32, #tpu.memory_space<vmem>>, vector<1x8x16x32xf32>,
    return
  }
  func.func @transform_0(%arg0: i32, %arg1: i32) -> (i32, i32, i32, i32) {
    %c0_i32 = arith.constant 0 : i32
    %c0_i32_0 = arith.constant 0 : i32
    %c0_i32_1 = arith.constant 0 : i32
    return %arg0, %c0_i32, %arg1, %c0_i32_0 : i32, i32, i32, i32
  }
  func.func @transform_1(%arg0: i32, %arg1: i32) -> (i32, i32, i32, i32) {
    %c0_i32 = arith.constant 0 : i32
    %c0_i32_0 = arith.constant 0 : i32
    %c0_i32_1 = arith.constant 0 : i32
    %c0_i32_2 = arith.constant 0 : i32
    %c0_i32_3 = arith.constant 0 : i32
    return %c0_i32, %c0_i32_0, %c0_i32_1, %c0_i32_2 : i32, i32, i32, i32
  }
  func.func @transform_2(%arg0: i32, %arg1: i32) -> (i32, i32, i32) {
    %c0_i32 = arith.constant 0 : i32
    %c0_i32_0 = arith.constant 0 : i32
    %c0_i32_1 = arith.constant 0 : i32
    %c0_i32_2 = arith.constant 0 : i32
    return %c0_i32, %c0_i32_0, %c0_i32_1 : i32, i32, i32
  }
  func.func @transform_3(%arg0: i32, %arg1: i32) -> (i32, i32, i32, i32) {
    %c0_i32 = arith.constant 0 : i32
    %c0_i32_0 = arith.constant 0 : i32
    %c0_i32_1 = arith.constant 0 : i32
    return %arg0, %c0_i32, %arg1, %c0_i32_0 : i32, i32, i32, i32
  }
}

</mosaic_0001>

<llo_original>
// kernel: up_forward.1
$region0: #{up_forward.1}
  #allocation0 [shape = 'u32[]', space=smem, size = 0x4, offset = 0x4, fixed_abs, tag = 'smem constant byte address 0x4 - core index']
  #allocation1 [shape = 'u32[144,128]{1,0:T(1,128)}', space=vmem, size = 0x12000, scoped, tag = 'internal scratch']
  %s0 = inlined_call_operand.vmem [shape: f32[2,4,16,32], index: 0, kind: input, shape index: {}]
  %s1 = inlined_call_operand.vmem [shape: f32[8,8,1,32], index: 1, kind: input, shape index: {}]
  %s2 = inlined_call_operand.vmem [shape: f32[8,1,1], index: 2, kind: input, shape index: {}]
  %s3 = inlined_call_operand.vmem [shape: f32[2,8,16,64], index: 3, kind: output, shape index: {}]
  %s4 = sld [smem:[#allocation0]]
  $region45: #{up_forward.1} parent=0
    _
  %s6 = ssub.s32 1, %s4
  %s7 = scalar_select 0, %s6, %s4
  loop: start=0, step=1, limit=4
  $region2: #{up_forward.1} parent=0 // loop_pre_header
    _
  $region3: #{up_forward.1} parent=0 // loop_header
    %s9 = sphi 0, %s13
    %p10 = scmp.ge.s32.totalorder %s9, 4
    %s16 = sphi 0, %s28
    %s17 = sphi 0, %s24
    %s18 = sphi 0, %s16
    %s19 = sphi 0, %s17
    %s20 = sphi 0, %s18
    %s21 = sphi 0, %s19
    %s33 = sphi 0, %s35
    %s36 = sphi 0, %s33
    %s37 = sphi 0, %s36
    %s53 = sphi 0, %s37
    %s57 = sphi 0, %s57
    %s59 = sphi 0, %s57
    %s60 = sphi 0, %s59
    %s74 = sphi 0, %s60
    %s78 = sphi 0, %s78
    %s80 = sphi 0, %s78
    %s81 = sphi 0, %s80
    %s95 = sphi 0, %s81
    %s103 = sphi 0, %s105
    %s106 = sphi 0, %s103
    %s107 = sphi 0, %s106
    %s123 = sphi 0, %s107
  $region4: #{up_forward.1} parent=0 // loop_header_branch
    %12 = sbr.rel (%p10) target = $region8
  $region5: #{up_forward.1} parent=0 // loop_body
    %s14 = ssub.s32 %s9, 1
    %s15 = ssub.s32 %s9, 2
    %s22 = sadd.s32 1, %s17
    %p23 = scmp.ge.s32.totalorder %s22, 1
    %s24 = scalar_select %p23, 0, %s22
    %s25 = sadd.s32 1, %s16
    %s26 = scalar_select %p23, %s25, %s16
    %p27 = scmp.ge.s32.totalorder %s26, 2
    %s28 = scalar_select %p27, 0, %s26
    %s29 = ssub.s32 %s16, %s28
    %s30 = ssub.s32 %s17, %s24
    %s31 = sor.u32 %s29, %s30
    %p32 = scmp.eq.s32.totalorder %s31, 0
    %s34 = sadd.s32 %s33, 1
    %s35 = scalar_select %p32, %s33, %s34
    %p38 = pneg %p32
    %p39 = scmp.eq.s32.totalorder %s9, 1
    %p40 = por %p38, %p39
    %p41 = scmp.ne.s32.totalorder %s33, %s36
    %p42 = scmp.eq.s32.totalorder %s9, 0
    %p43 = por %p41, %p42
    %p44 = scmp.ne.s32.totalorder %s33, %s36
    %p45 = scmp.eq.s32.totalorder %s14, 1
    %p46 = por %p44, %p45
    %p47 = scmp.ne.s32.totalorder %s36, %s37
    %p48 = scmp.eq.s32.totalorder %s14, 0
    %p49 = por %p47, %p48
    %p50 = scmp.ne.s32.totalorder %s36, %s37
    %p51 = scmp.eq.s32.totalorder %s15, 1
    %p52 = por %p50, %p51
    %p54 = scmp.ne.s32.totalorder %s37, %s53
    %p55 = scmp.eq.s32.totalorder %s15, 0
    %p56 = por %p54, %p55
    %s58 = sadd.s32 %s57, 1
    %p61 = scmp.eq.s32.totalorder %s9, 1
    %p62 = scmp.ne.s32.totalorder %s57, %s59
    %p63 = scmp.eq.s32.totalorder %s9, 0
    %p64 = por %p62, %p63
    %p65 = scmp.ne.s32.totalorder %s57, %s59
    %p66 = scmp.eq.s32.totalorder %s14, 1
    %p67 = por %p65, %p66
    %p68 = scmp.ne.s32.totalorder %s59, %s60
    %p69 = scmp.eq.s32.totalorder %s14, 0
    %p70 = por %p68, %p69
    %p71 = scmp.ne.s32.totalorder %s59, %s60
    %p72 = scmp.eq.s32.totalorder %s15, 1
    %p73 = por %p71, %p72
    %p75 = scmp.ne.s32.totalorder %s60, %s74
    %p76 = scmp.eq.s32.totalorder %s15, 0
    %p77 = por %p75, %p76
    %s79 = sadd.s32 %s78, 1
    %p82 = scmp.eq.s32.totalorder %s9, 1
    %p83 = scmp.ne.s32.totalorder %s78, %s80
    %p84 = scmp.eq.s32.totalorder %s9, 0
    %p85 = por %p83, %p84
    %p86 = scmp.ne.s32.totalorder %s78, %s80
    %p87 = scmp.eq.s32.totalorder %s14, 1
    %p88 = por %p86, %p87
    %p89 = scmp.ne.s32.totalorder %s80, %s81
    %p90 = scmp.eq.s32.totalorder %s14, 0
    %p91 = por %p89, %p90
    %p92 = scmp.ne.s32.totalorder %s80, %s81
    %p93 = scmp.eq.s32.totalorder %s15, 1
    %p94 = por %p92, %p93
    %p96 = scmp.ne.s32.totalorder %s81, %s95
    %p97 = scmp.eq.s32.totalorder %s15, 0
    %p98 = por %p96, %p97
    %s99 = ssub.s32 %s16, %s28
    %s100 = ssub.s32 %s17, %s24
    %s101 = sor.u32 %s99, %s100
    %p102 = scmp.eq.s32.totalorder %s101, 0
    %s104 = sadd.s32 %s103, 1
    %s105 = scalar_select %p102, %s103, %s104
    %p108 = pneg %p102
    %p109 = scmp.eq.s32.totalorder %s9, 1
    %p110 = por %p108, %p109
    %p111 = scmp.ne.s32.totalorder %s103, %s106
    %p112 = scmp.eq.s32.totalorder %s9, 0
    %p113 = por %p111, %p112
    %p114 = scmp.ne.s32.totalorder %s103, %s106
    %p115 = scmp.eq.s32.totalorder %s14, 1
    %p116 = por %p114, %p115
    %p117 = scmp.ne.s32.totalorder %s106, %s107
    %p118 = scmp.eq.s32.totalorder %s14, 0
    %p119 = por %p117, %p118
    %p120 = scmp.ne.s32.totalorder %s106, %s107
    %p121 = scmp.eq.s32.totalorder %s15, 1
    %p122 = por %p120, %p121
    %p124 = scmp.ne.s32.totalorder %s107, %s123
    %p125 = scmp.eq.s32.totalorder %s15, 0
    %p126 = por %p124, %p125
    %p127 = scmp.le.s32.totalorder 1, %s9
    %p128 = scmp.lt.s32.totalorder %s9, 3
    %p129 = pnand %p127, %p128
    %p130 = pneg %p129
    // Predicated region
    $region9: #{up_forward.1} parent=5 // pred_check
      _
    $region10: #{up_forward.1} parent=5 // pred_check_branch
      %132 = sbr.rel (%p129) target = $region12
    $region11: #{up_forward.1} parent=5 // pred_region
      %s133 = ssub.s32 %s9, 1
      // Predicated region
      $region13: #{up_forward.1} parent=11 // pred_check
        %p134 = pneg %p70
      $region14: #{up_forward.1} parent=11 // pred_check_branch
        %136 = sbr.rel (%p134) target = $region16
      $region15: #{up_forward.1} parent=11 // pred_region
        _
      $region16: #{up_forward.1} parent=11 // pred_fallthru
        _
      // Predicated region
      $region17: #{up_forward.1} parent=11 // pred_check
        %p137 = pneg %p91
      $region18: #{up_forward.1} parent=11 // pred_check_branch
        %139 = sbr.rel (%p137) target = $region20
      $region19: #{up_forward.1} parent=11 // pred_region
        _
      $region20: #{up_forward.1} parent=11 // pred_fallthru
        _
    $region12: #{up_forward.1} parent=5 // pred_fallthru
      _
    %p140 = scmp.lt.s32.totalorder %s9, 2
    // Predicated region
    $region21: #{up_forward.1} parent=5 // pred_check
      %p141 = pneg %p140
    $region22: #{up_forward.1} parent=5 // pred_check_branch
      %143 = sbr.rel (%p141) target = $region24
    $region23: #{up_forward.1} parent=5 // pred_region
      // Predicated region
      $region25: #{up_forward.1} parent=23 // pred_check
        %p144 = pneg %p43
      $region26: #{up_forward.1} parent=23 // pred_check_branch
        %146 = sbr.rel (%p144) target = $region28
      $region27: #{up_forward.1} parent=23 // pred_region
        %s147 = smul.u32 2, %s17
        %p148 = scmp.lt.s32.totalorder %s16, 1
        %s149 = scalar_select %p148, %s16, 1
        %p150 = scmp.lt.s32.totalorder %s147, 1
        %s151 = scalar_select %p150, %s147, 1
        %s152 = smul.addr %s149, 8
        %s153 = sadd.s32 %s151, %s152
        %s154 = smul.addr %s153, 8
        %s155 = scalar_lea.vmem %s0, %s154
        %s156 = smul.u32 2, %s17
      $region28: #{up_forward.1} parent=23 // pred_fallthru
        _
    $region24: #{up_forward.1} parent=5 // pred_fallthru
      _
    %p157 = scmp.le.s32.totalorder 1, %s9
    %p158 = scmp.lt.s32.totalorder %s9, 3
    %p159 = pnand %p157, %p158
    %p160 = pneg %p159
    // Predicated region
    $region29: #{up_forward.1} parent=5 // pred_check
      _
    $region30: #{up_forward.1} parent=5 // pred_check_branch
      %162 = sbr.rel (%p159) target = $region32
    $region31: #{up_forward.1} parent=5 // pred_region
      %s163 = ssub.s32 %s9, 1
      %s164 = smul.u32 2, %s19
      %p165 = scmp.lt.s32.totalorder %s18, 1
      %s166 = scalar_select %p165, %s18, 1
      %p167 = scmp.lt.s32.totalorder %s164, 1
      %s168 = scalar_select %p167, %s164, 1
      %s169 = smul.addr %s166, 8
      %s170 = sadd.s32 %s168, %s169
      %s171 = smul.addr %s170, 8
      %s172 = scalar_lea.vmem %s0, %s171
      %p173 = pneg %p49
      %p174 = pneg %p46
      %p175 = pneg %p70
      %p176 = pneg %p67
      %p177 = pneg %p91
      %p178 = pneg %p88
      %p179 = pneg %p119
      %p180 = pneg %p116
      %s181 = smul.u32 2, %s19
      %p182 = scmp.lt.s32.totalorder %s18, 1
      %s183 = scalar_select %p182, %s18, 1
      %p184 = scmp.lt.s32.totalorder %s181, 1
      %s185 = scalar_select %p184, %s181, 1
      %s186 = smul.addr %s183, 16
      %s187 = sadd.s32 %s185, %s186
      %s188 = smul.addr %s187, 8
      %s189 = scalar_lea.vmem %s3, %s188
      %s190 = smul.u32 2, %s19
      %p191 = scmp.lt.s32.totalorder %s18, 1
      %s192 = scalar_select %p191, %s18, 1
      %p193 = scmp.lt.s32.totalorder %s190, 1
      %s194 = scalar_select %p193, %s190, 1
      %s195 = smul.addr %s192, 8
      %s196 = sadd.s32 %s194, %s195
      %s197 = smul.addr %s196, 8
      %s198 = scalar_lea.vmem %s0, %s197
      %s199 = smul.u32 2, %s19
      %s200 = smul.u32 2, %s19
      %p201 = scmp.lt.s32.totalorder %s18, 1
      %s202 = scalar_select %p201, %s18, 1
      %p203 = scmp.lt.s32.totalorder %s200, 1
      %s204 = scalar_select %p203, %s200, 1
      %s205 = smul.addr %s202, 16
      %s206 = sadd.s32 %s204, %s205
      %s207 = smul.addr %s206, 8
      %s208 = scalar_lea.vmem %s3, %s207
      %s209 = smul.u32 2, %s19
      %v210 = vld [vmem:[%s2] sm:$0x1]
      %v211 = vld [vmem:[%s2 + $0x1] sm:$0x1]
      %v212 = vld [vmem:[%s2 + $0x2] sm:$0x1]
      %v213 = vld [vmem:[%s2 + $0x3] sm:$0x1]
      %v214 = vld [vmem:[%s2 + $0x4] sm:$0x1]
      %v215 = vld [vmem:[%s2 + $0x5] sm:$0x1]
      %v216 = vld [vmem:[%s2 + $0x6] sm:$0x1]
      %v217 = vld [vmem:[%s2 + $0x7] sm:$0x1]
      %v218 = vld [vmem:[%s198] sm:$0xff]
      %v219 = vld [vmem:[%s198 + $0x8] sm:$0xff]
      %s220 = scalar_lea.vmem %s198, 16
      %v221 = vld [vmem:[%s220] sm:$0xff]
      %v222 = vld [vmem:[%s220 + $0x8] sm:$0xff]
      %s223 = scalar_lea.vmem %s198, 32
      %v224 = vld [vmem:[%s223] sm:$0xff]
      %v225 = vld [vmem:[%s223 + $0x8] sm:$0xff]
      %s226 = scalar_lea.vmem %s198, 48
      %v227 = vld [vmem:[%s226] sm:$0xff]
      %v228 = vld [vmem:[%s226 + $0x8] sm:$0xff]
      %v229 = vld [vmem:[%s1] sm:$0x1]
      %v230 = vld [vmem:[%s1 + $0x1] sm:$0x1]
      %v231 = vld [vmem:[%s1 + $0x2] sm:$0x1]
      %v232 = vld [vmem:[%s1 + $0x3] sm:$0x1]
      %v233 = vld [vmem:[%s1 + $0x4] sm:$0x1]
      %v234 = vld [vmem:[%s1 + $0x5] sm:$0x1]
      %v235 = vld [vmem:[%s1 + $0x6] sm:$0x1]
      %v236 = vld [vmem:[%s1 + $0x7] sm:$0x1]
      %v245 = vlaneseq
      %v246 = vshrl.u32 %v245, 7
      %v247 = vsub.s32 0, %v246
      %v248 = vrot.slane %v229, %v247
      %v249 = vlaneseq
      %v250 = vshrl.u32 %v249, 7
      %v251 = vsub.s32 0, %v250
      %v252 = vrot.slane %v230, %v251
      %v253 = vlaneseq
      %v254 = vshrl.u32 %v253, 7
      %v255 = vsub.s32 0, %v254
      %v256 = vrot.slane %v231, %v255
      %v257 = vlaneseq
      %v258 = vshrl.u32 %v257, 7
      %v259 = vsub.s32 0, %v258
      %v260 = vrot.slane %v232, %v259
      %v261 = vlaneseq
      %v262 = vshrl.u32 %v261, 7
      %v263 = vsub.s32 0, %v262
      %v264 = vrot.slane %v233, %v263
      %v265 = vlaneseq
      %v266 = vshrl.u32 %v265, 7
      %v267 = vsub.s32 0, %v266
      %v268 = vrot.slane %v234, %v267
      %v269 = vlaneseq
      %v270 = vshrl.u32 %v269, 7
      %v271 = vsub.s32 0, %v270
      %v272 = vrot.slane %v235, %v271
      %v273 = vlaneseq
      %v274 = vshrl.u32 %v273, 7
      %v275 = vsub.s32 0, %v274
      %v276 = vrot.slane %v236, %v275
      %v285 = vmul.f32 %v248, %v218
      %v286 = vmul.f32 %v248, %v219
      %v287 = vmul.f32 %v252, %v218
      %v288 = vmul.f32 %v252, %v219
      %v289 = vmul.f32 %v256, %v218
      %v290 = vmul.f32 %v256, %v219
      %v291 = vmul.f32 %v260, %v218
      %v292 = vmul.f32 %v260, %v219
      %v293 = vmul.f32 %v264, %v218
      %v294 = vmul.f32 %v264, %v219
      %v295 = vmul.f32 %v268, %v218
      %v296 = vmul.f32 %v268, %v219
      %v297 = vmul.f32 %v272, %v218
      %v298 = vmul.f32 %v272, %v219
      %v299 = vmul.f32 %v276, %v218
      %v300 = vmul.f32 %v276, %v219
      %v309 = vlaneseq
      %v310 = vshrl.u32 %v309, 7
      %v311 = vsub.s32 0, %v310
      %v312 = vrot.slane %v210, %v311
      %v313 = vlaneseq
      %v314 = vshrl.u32 %v313, 7
      %v315 = vsub.s32 0, %v314
      %v316 = vrot.slane %v211, %v315
      %v317 = vlaneseq
      %v318 = vshrl.u32 %v317, 7
      %v319 = vsub.s32 0, %v318
      %v320 = vrot.slane %v212, %v319
      %v321 = vlaneseq
      %v322 = vshrl.u32 %v321, 7
      %v323 = vsub.s32 0, %v322
      %v324 = vrot.slane %v213, %v323
      %v325 = vlaneseq
      %v326 = vshrl.u32 %v325, 7
      %v327 = vsub.s32 0, %v326
      %v328 = vrot.slane %v214, %v327
      %v329 = vlaneseq
      %v330 = vshrl.u32 %v329, 7
      %v331 = vsub.s32 0, %v330
      %v332 = vrot.slane %v215, %v331
      %v333 = vlaneseq
      %v334 = vshrl.u32 %v333, 7
      %v335 = vsub.s32 0, %v334
      %v336 = vrot.slane %v216, %v335
      %v337 = vlaneseq
      %v338 = vshrl.u32 %v337, 7
      %v339 = vsub.s32 0, %v338
      %v340 = vrot.slane %v217, %v339
      %341 = vset.pattern.permute.xlu0 0
      %342 = vperm.xlu0 %341, %v312
      %v343 = vpop.permute.xlu0 %342
      %345 = vset.pattern.permute.xlu0 0
      %346 = vperm.xlu0 %345, %v316
      %v347 = vpop.permute.xlu0 %346
      %349 = vset.pattern.permute.xlu0 0
      %350 = vperm.xlu0 %349, %v320
      %v351 = vpop.permute.xlu0 %350
      %353 = vset.pattern.permute.xlu0 0
      %354 = vperm.xlu0 %353, %v324
      %v355 = vpop.permute.xlu0 %354
      %357 = vset.pattern.permute.xlu0 0
      %358 = vperm.xlu0 %357, %v328
      %v359 = vpop.permute.xlu0 %358
      %361 = vset.pattern.permute.xlu0 0
      %362 = vperm.xlu0 %361, %v332
      %v363 = vpop.permute.xlu0 %362
      %365 = vset.pattern.permute.xlu0 0
      %366 = vperm.xlu0 %365, %v336
      %v367 = vpop.permute.xlu0 %366
      %369 = vset.pattern.permute.xlu0 0
      %370 = vperm.xlu0 %369, %v340
      %v371 = vpop.permute.xlu0 %370
      %v373 = vadd.f32 %v285, %v343
      %v374 = vadd.f32 %v286, %v343
      %v375 = vadd.f32 %v287, %v347
      %v376 = vadd.f32 %v288, %v347
      %v377 = vadd.f32 %v289, %v351
      %v378 = vadd.f32 %v290, %v351
      %v379 = vadd.f32 %v291, %v355
      %v380 = vadd.f32 %v292, %v355
      %v381 = vadd.f32 %v293, %v359
      %v382 = vadd.f32 %v294, %v359
      %v383 = vadd.f32 %v295, %v363
      %v384 = vadd.f32 %v296, %v363
      %v385 = vadd.f32 %v297, %v367
      %v386 = vadd.f32 %v298, %v367
      %v387 = vadd.f32 %v299, %v371
      %v388 = vadd.f32 %v300, %v371
      %s389 = scalar_lea.vmem %s1, 8
      %v390 = vld [vmem:[%s389] sm:$0x1]
      %v391 = vld [vmem:[%s389 + $0x1] sm:$0x1]
      %v392 = vld [vmem:[%s389 + $0x2] sm:$0x1]
      %v393 = vld [vmem:[%s389 + $0x3] sm:$0x1]
      %v394 = vld [vmem:[%s389 + $0x4] sm:$0x1]
      %v395 = vld [vmem:[%s389 + $0x5] sm:$0x1]
      %v396 = vld [vmem:[%s389 + $0x6] sm:$0x1]
      %v397 = vld [vmem:[%s389 + $0x7] sm:$0x1]
      %v406 = vlaneseq
      %v407 = vshrl.u32 %v406, 7
      %v408 = vsub.s32 0, %v407
      %v409 = vrot.slane %v390, %v408
      %v410 = vlaneseq
      %v411 = vshrl.u32 %v410, 7
      %v412 = vsub.s32 0, %v411
      %v413 = vrot.slane %v391, %v412
      %v414 = vlaneseq
      %v415 = vshrl.u32 %v414, 7
      %v416 = vsub.s32 0, %v415
      %v417 = vrot.slane %v392, %v416
      %v418 = vlaneseq
      %v419 = vshrl.u32 %v418, 7
      %v420 = vsub.s32 0, %v419
      %v421 = vrot.slane %v393, %v420
      %v422 = vlaneseq
      %v423 = vshrl.u32 %v422, 7
      %v424 = vsub.s32 0, %v423
      %v425 = vrot.slane %v394, %v424
      %v426 = vlaneseq
      %v427 = vshrl.u32 %v426, 7
      %v428 = vsub.s32 0, %v427
      %v429 = vrot.slane %v395, %v428
      %v430 = vlaneseq
      %v431 = vshrl.u32 %v430, 7
      %v432 = vsub.s32 0, %v431
      %v433 = vrot.slane %v396, %v432
      %v434 = vlaneseq
      %v435 = vshrl.u32 %v434, 7
      %v436 = vsub.s32 0, %v435
      %v437 = vrot.slane %v397, %v436
      %v446 = vmul.f32 %v409, %v221
      %v447 = vmul.f32 %v409, %v222
      %v448 = vmul.f32 %v413, %v221
      %v449 = vmul.f32 %v413, %v222
      %v450 = vmul.f32 %v417, %v221
      %v451 = vmul.f32 %v417, %v222
      %v452 = vmul.f32 %v421, %v221
      %v453 = vmul.f32 %v421, %v222
      %v454 = vmul.f32 %v425, %v221
      %v455 = vmul.f32 %v425, %v222
      %v456 = vmul.f32 %v429, %v221
      %v457 = vmul.f32 %v429, %v222
      %v458 = vmul.f32 %v433, %v221
      %v459 = vmul.f32 %v433, %v222
      %v460 = vmul.f32 %v437, %v221
      %v461 = vmul.f32 %v437, %v222
      %v462 = vadd.f32 %v373, %v446
      %v463 = vadd.f32 %v374, %v447
      %v464 = vadd.f32 %v375, %v448
      %v465 = vadd.f32 %v376, %v449
      %v466 = vadd.f32 %v377, %v450
      %v467 = vadd.f32 %v378, %v451
      %v468 = vadd.f32 %v379, %v452
      %v469 = vadd.f32 %v380, %v453
      %v470 = vadd.f32 %v381, %v454
      %v471 = vadd.f32 %v382, %v455
      %v472 = vadd.f32 %v383, %v456
      %v473 = vadd.f32 %v384, %v457
      %v474 = vadd.f32 %v385, %v458
      %v475 = vadd.f32 %v386, %v459
      %v476 = vadd.f32 %v387, %v460
      %v477 = vadd.f32 %v388, %v461
      %s478 = scalar_lea.vmem %s1, 16
      %v479 = vld [vmem:[%s478] sm:$0x1]
      %v480 = vld [vmem:[%s478 + $0x1] sm:$0x1]
      %v481 = vld [vmem:[%s478 + $0x2] sm:$0x1]
      %v482 = vld [vmem:[%s478 + $0x3] sm:$0x1]
      %v483 = vld [vmem:[%s478 + $0x4] sm:$0x1]
      %v484 = vld [vmem:[%s478 + $0x5] sm:$0x1]
      %v485 = vld [vmem:[%s478 + $0x6] sm:$0x1]
      %v486 = vld [vmem:[%s478 + $0x7] sm:$0x1]
      %v495 = vlaneseq
      %v496 = vshrl.u32 %v495, 7
      %v497 = vsub.s32 0, %v496
      %v498 = vrot.slane %v479, %v497
      %v499 = vlaneseq
      %v500 = vshrl.u32 %v499, 7
      %v501 = vsub.s32 0, %v500
      %v502 = vrot.slane %v480, %v501
      %v503 = vlaneseq
      %v504 = vshrl.u32 %v503, 7
      %v505 = vsub.s32 0, %v504
      %v506 = vrot.slane %v481, %v505
      %v507 = vlaneseq
      %v508 = vshrl.u32 %v507, 7
      %v509 = vsub.s32 0, %v508
      %v510 = vrot.slane %v482, %v509
      %v511 = vlaneseq
      %v512 = vshrl.u32 %v511, 7
      %v513 = vsub.s32 0, %v512
      %v514 = vrot.slane %v483, %v513
      %v515 = vlaneseq
      %v516 = vshrl.u32 %v515, 7
      %v517 = vsub.s32 0, %v516
      %v518 = vrot.slane %v484, %v517
      %v519 = vlaneseq
      %v520 = vshrl.u32 %v519, 7
      %v521 = vsub.s32 0, %v520
      %v522 = vrot.slane %v485, %v521
      %v523 = vlaneseq
      %v524 = vshrl.u32 %v523, 7
      %v525 = vsub.s32 0, %v524
      %v526 = vrot.slane %v486, %v525
      %v535 = vmul.f32 %v498, %v224
      %v536 = vmul.f32 %v498, %v225
      %v537 = vmul.f32 %v502, %v224
      %v538 = vmul.f32 %v502, %v225
      %v539 = vmul.f32 %v506, %v224
      %v540 = vmul.f32 %v506, %v225
      %v541 = vmul.f32 %v510, %v224
      %v542 = vmul.f32 %v510, %v225
      %v543 = vmul.f32 %v514, %v224
      %v544 = vmul.f32 %v514, %v225
      %v545 = vmul.f32 %v518, %v224
      %v546 = vmul.f32 %v518, %v225
      %v547 = vmul.f32 %v522, %v224
      %v548 = vmul.f32 %v522, %v225
      %v549 = vmul.f32 %v526, %v224
      %v550 = vmul.f32 %v526, %v225
      %v551 = vadd.f32 %v462, %v535
      %v552 = vadd.f32 %v463, %v536
      %v553 = vadd.f32 %v464, %v537
      %v554 = vadd.f32 %v465, %v538
      %v555 = vadd.f32 %v466, %v539
      %v556 = vadd.f32 %v467, %v540
      %v557 = vadd.f32 %v468, %v541
      %v558 = vadd.f32 %v469, %v542
      %v559 = vadd.f32 %v470, %v543
      %v560 = vadd.f32 %v471, %v544
      %v561 = vadd.f32 %v472, %v545
      %v562 = vadd.f32 %v473, %v546
      %v563 = vadd.f32 %v474, %v547
      %v564 = vadd.f32 %v475, %v548
      %v565 = vadd.f32 %v476, %v549
      %v566 = vadd.f32 %v477, %v550
      %s567 = scalar_lea.vmem %s1, 24
      %v568 = vld [vmem:[%s567] sm:$0x1]
      %v569 = vld [vmem:[%s567 + $0x1] sm:$0x1]
      %v570 = vld [vmem:[%s567 + $0x2] sm:$0x1]
      %v571 = vld [vmem:[%s567 + $0x3] sm:$0x1]
      %v572 = vld [vmem:[%s567 + $0x4] sm:$0x1]
      %v573 = vld [vmem:[%s567 + $0x5] sm:$0x1]
      %v574 = vld [vmem:[%s567 + $0x6] sm:$0x1]
      %v575 = vld [vmem:[%s567 + $0x7] sm:$0x1]
      %v584 = vlaneseq
      %v585 = vshrl.u32 %v584, 7
      %v586 = vsub.s32 0, %v585
      %v587 = vrot.slane %v568, %v586
      %v588 = vlaneseq
      %v589 = vshrl.u32 %v588, 7
      %v590 = vsub.s32 0, %v589
      %v591 = vrot.slane %v569, %v590
      %v592 = vlaneseq
      %v593 = vshrl.u32 %v592, 7
      %v594 = vsub.s32 0, %v593
      %v595 = vrot.slane %v570, %v594
      %v596 = vlaneseq
      %v597 = vshrl.u32 %v596, 7
      %v598 = vsub.s32 0, %v597
      %v599 = vrot.slane %v571, %v598
      %v600 = vlaneseq
      %v601 = vshrl.u32 %v600, 7
      %v602 = vsub.s32 0, %v601
      %v603 = vrot.slane %v572, %v602
      %v604 = vlaneseq
      %v605 = vshrl.u32 %v604, 7
      %v606 = vsub.s32 0, %v605
      %v607 = vrot.slane %v573, %v606
      %v608 = vlaneseq
      %v609 = vshrl.u32 %v608, 7
      %v610 = vsub.s32 0, %v609
      %v611 = vrot.slane %v574, %v610
      %v612 = vlaneseq
      %v613 = vshrl.u32 %v612, 7
      %v614 = vsub.s32 0, %v613
      %v615 = vrot.slane %v575, %v614
      %v624 = vmul.f32 %v587, %v227
      %v625 = vmul.f32 %v587, %v228
      %v626 = vmul.f32 %v591, %v227
      %v627 = vmul.f32 %v591, %v228
      %v628 = vmul.f32 %v595, %v227
      %v629 = vmul.f32 %v595, %v228
      %v630 = vmul.f32 %v599, %v227
      %v631 = vmul.f32 %v599, %v228
      %v632 = vmul.f32 %v603, %v227
      %v633 = vmul.f32 %v603, %v228
      %v634 = vmul.f32 %v607, %v227
      %v635 = vmul.f32 %v607, %v228
      %v636 = vmul.f32 %v611, %v227
      %v637 = vmul.f32 %v611, %v228
      %v638 = vmul.f32 %v615, %v227
      %v639 = vmul.f32 %v615, %v228
      %v640 = vadd.f32 %v551, %v624
      %v641 = vadd.f32 %v552, %v625
      %v642 = vadd.f32 %v553, %v626
      %v643 = vadd.f32 %v554, %v627
      %v644 = vadd.f32 %v555, %v628
      %v645 = vadd.f32 %v556, %v629
      %v646 = vadd.f32 %v557, %v630
      %v647 = vadd.f32 %v558, %v631
      %v648 = vadd.f32 %v559, %v632
      %v649 = vadd.f32 %v560, %v633
      %v650 = vadd.f32 %v561, %v634
      %v651 = vadd.f32 %v562, %v635
      %v652 = vadd.f32 %v563, %v636
      %v653 = vadd.f32 %v564, %v637
      %v654 = vadd.f32 %v565, %v638
      %v655 = vadd.f32 %v566, %v639
      %v656 = vmax.f32 %v640, 0.0
      %v657 = vmax.f32 %v641, 0.0
      %v658 = vmax.f32 %v642, 0.0
      %v659 = vmax.f32 %v643, 0.0
      %v660 = vmax.f32 %v644, 0.0
      %v661 = vmax.f32 %v645, 0.0
      %v662 = vmax.f32 %v646, 0.0
      %v663 = vmax.f32 %v647, 0.0
      %v664 = vmax.f32 %v648, 0.0
      %v665 = vmax.f32 %v649, 0.0
      %v666 = vmax.f32 %v650, 0.0
      %v667 = vmax.f32 %v651, 0.0
      %v668 = vmax.f32 %v652, 0.0
      %v669 = vmax.f32 %v653, 0.0
      %v670 = vmax.f32 %v654, 0.0
      %v671 = vmax.f32 %v655, 0.0
      %vm672 = vcmask 261120
      %673 = vst.msk [vmem:[%s208] sm:$0xff] %vm672, %v656
      %674 = vst.msk [vmem:[%s208 + $0x8] sm:$0xff] %vm672, %v657
      %675 = vst.msk [vmem:[%s208 + $0x10] sm:$0xff] %vm672, %v658
      %676 = vst.msk [vmem:[%s208 + $0x18] sm:$0xff] %vm672, %v659
      %677 = vst.msk [vmem:[%s208 + $0x20] sm:$0xff] %vm672, %v660
      %678 = vst.msk [vmem:[%s208 + $0x28] sm:$0xff] %vm672, %v661
      %679 = vst.msk [vmem:[%s208 + $0x30] sm:$0xff] %vm672, %v662
      %680 = vst.msk [vmem:[%s208 + $0x38] sm:$0xff] %vm672, %v663
      %681 = vst.msk [vmem:[%s208 + $0x40] sm:$0xff] %vm672, %v664
      %682 = vst.msk [vmem:[%s208 + $0x48] sm:$0xff] %vm672, %v665
      %683 = vst.msk [vmem:[%s208 + $0x50] sm:$0xff] %vm672, %v666
      %684 = vst.msk [vmem:[%s208 + $0x58] sm:$0xff] %vm672, %v667
      %685 = vst.msk [vmem:[%s208 + $0x60] sm:$0xff] %vm672, %v668
      %686 = vst.msk [vmem:[%s208 + $0x68] sm:$0xff] %vm672, %v669
      %687 = vst.msk [vmem:[%s208 + $0x70] sm:$0xff] %vm672, %v670
      %688 = vst.msk [vmem:[%s208 + $0x78] sm:$0xff] %vm672, %v671
      %s689 = scalar_lea.vmem %s1, 32
      %v690 = vld [vmem:[%s689] sm:$0x1]
      %v691 = vld [vmem:[%s689 + $0x1] sm:$0x1]
      %v692 = vld [vmem:[%s689 + $0x2] sm:$0x1]
      %v693 = vld [vmem:[%s689 + $0x3] sm:$0x1]
      %v694 = vld [vmem:[%s689 + $0x4] sm:$0x1]
      %v695 = vld [vmem:[%s689 + $0x5] sm:$0x1]
      %v696 = vld [vmem:[%s689 + $0x6] sm:$0x1]
      %v697 = vld [vmem:[%s689 + $0x7] sm:$0x1]
      %v706 = vlaneseq
      %v707 = vshrl.u32 %v706, 7
      %v708 = vsub.s32 0, %v707
      %v709 = vrot.slane %v690, %v708
      %v710 = vlaneseq
      %v711 = vshrl.u32 %v710, 7
      %v712 = vsub.s32 0, %v711
      %v713 = vrot.slane %v691, %v712
      %v714 = vlaneseq
      %v715 = vshrl.u32 %v714, 7
      %v716 = vsub.s32 0, %v715
      %v717 = vrot.slane %v692, %v716
      %v718 = vlaneseq
      %v719 = vshrl.u32 %v718, 7
      %v720 = vsub.s32 0, %v719
      %v721 = vrot.slane %v693, %v720
      %v722 = vlaneseq
      %v723 = vshrl.u32 %v722, 7
      %v724 = vsub.s32 0, %v723
      %v725 = vrot.slane %v694, %v724
      %v726 = vlaneseq
      %v727 = vshrl.u32 %v726, 7
      %v728 = vsub.s32 0, %v727
      %v729 = vrot.slane %v695, %v728
      %v730 = vlaneseq
      %v731 = vshrl.u32 %v730, 7
      %v732 = vsub.s32 0, %v731
      %v733 = vrot.slane %v696, %v732
      %v734 = vlaneseq
      %v735 = vshrl.u32 %v734, 7
      %v736 = vsub.s32 0, %v735
      %v737 = vrot.slane %v697, %v736
      %v746 = vmul.f32 %v709, %v218
      %v747 = vmul.f32 %v709, %v219
      %v748 = vmul.f32 %v713, %v218
      %v749 = vmul.f32 %v713, %v219
      %v750 = vmul.f32 %v717, %v218
      %v751 = vmul.f32 %v717, %v219
      %v752 = vmul.f32 %v721, %v218
      %v753 = vmul.f32 %v721, %v219
      %v754 = vmul.f32 %v725, %v218
      %v755 = vmul.f32 %v725, %v219
      %v756 = vmul.f32 %v729, %v218
      %v757 = vmul.f32 %v729, %v219
      %v758 = vmul.f32 %v733, %v218
      %v759 = vmul.f32 %v733, %v219
      %v760 = vmul.f32 %v737, %v218
      %v761 = vmul.f32 %v737, %v219
      %v762 = vadd.f32 %v746, %v343
      %v763 = vadd.f32 %v747, %v343
      %v764 = vadd.f32 %v748, %v347
      %v765 = vadd.f32 %v749, %v347
      %v766 = vadd.f32 %v750, %v351
      %v767 = vadd.f32 %v751, %v351
      %v768 = vadd.f32 %v752, %v355
      %v769 = vadd.f32 %v753, %v355
      %v770 = vadd.f32 %v754, %v359
      %v771 = vadd.f32 %v755, %v359
      %v772 = vadd.f32 %v756, %v363
      %v773 = vadd.f32 %v757, %v363
      %v774 = vadd.f32 %v758, %v367
      %v775 = vadd.f32 %v759, %v367
      %v776 = vadd.f32 %v760, %v371
      %v777 = vadd.f32 %v761, %v371
      %s778 = scalar_lea.vmem %s1, 40
      %v779 = vld [vmem:[%s778] sm:$0x1]
      %v780 = vld [vmem:[%s778 + $0x1] sm:$0x1]
      %v781 = vld [vmem:[%s778 + $0x2] sm:$0x1]
      %v782 = vld [vmem:[%s778 + $0x3] sm:$0x1]
      %v783 = vld [vmem:[%s778 + $0x4] sm:$0x1]
      %v784 = vld [vmem:[%s778 + $0x5] sm:$0x1]
      %v785 = vld [vmem:[%s778 + $0x6] sm:$0x1]
      %v786 = vld [vmem:[%s778 + $0x7] sm:$0x1]
      %v795 = vlaneseq
      %v796 = vshrl.u32 %v795, 7
      %v797 = vsub.s32 0, %v796
      %v798 = vrot.slane %v779, %v797
      %v799 = vlaneseq
      %v800 = vshrl.u32 %v799, 7
      %v801 = vsub.s32 0, %v800
      %v802 = vrot.slane %v780, %v801
      %v803 = vlaneseq
      %v804 = vshrl.u32 %v803, 7
      %v805 = vsub.s32 0, %v804
      %v806 = vrot.slane %v781, %v805
      %v807 = vlaneseq
      %v808 = vshrl.u32 %v807, 7
      %v809 = vsub.s32 0, %v808
      %v810 = vrot.slane %v782, %v809
      %v811 = vlaneseq
      %v812 = vshrl.u32 %v811, 7
      %v813 = vsub.s32 0, %v812
      %v814 = vrot.slane %v783, %v813
      %v815 = vlaneseq
      %v816 = vshrl.u32 %v815, 7
      %v817 = vsub.s32 0, %v816
      %v818 = vrot.slane %v784, %v817
      %v819 = vlaneseq
      %v820 = vshrl.u32 %v819, 7
      %v821 = vsub.s32 0, %v820
      %v822 = vrot.slane %v785, %v821
      %v823 = vlaneseq
      %v824 = vshrl.u32 %v823, 7
      %v825 = vsub.s32 0, %v824
      %v826 = vrot.slane %v786, %v825
      %v835 = vmul.f32 %v798, %v221
      %v836 = vmul.f32 %v798, %v222
      %v837 = vmul.f32 %v802, %v221
      %v838 = vmul.f32 %v802, %v222
      %v839 = vmul.f32 %v806, %v221
      %v840 = vmul.f32 %v806, %v222
      %v841 = vmul.f32 %v810, %v221
      %v842 = vmul.f32 %v810, %v222
      %v843 = vmul.f32 %v814, %v221
      %v844 = vmul.f32 %v814, %v222
      %v845 = vmul.f32 %v818, %v221
      %v846 = vmul.f32 %v818, %v222
      %v847 = vmul.f32 %v822, %v221
      %v848 = vmul.f32 %v822, %v222
      %v849 = vmul.f32 %v826, %v221
      %v850 = vmul.f32 %v826, %v222
      %v851 = vadd.f32 %v762, %v835
      %v852 = vadd.f32 %v763, %v836
      %v853 = vadd.f32 %v764, %v837
      %v854 = vadd.f32 %v765, %v838
      %v855 = vadd.f32 %v766, %v839
      %v856 = vadd.f32 %v767, %v840
      %v857 = vadd.f32 %v768, %v841
      %v858 = vadd.f32 %v769, %v842
      %v859 = vadd.f32 %v770, %v843
      %v860 = vadd.f32 %v771, %v844
      %v861 = vadd.f32 %v772, %v845
      %v862 = vadd.f32 %v773, %v846
      %v863 = vadd.f32 %v774, %v847
      %v864 = vadd.f32 %v775, %v848
      %v865 = vadd.f32 %v776, %v849
      %v866 = vadd.f32 %v777, %v850
      %s867 = scalar_lea.vmem %s1, 48
      %v868 = vld [vmem:[%s867] sm:$0x1]
      %v869 = vld [vmem:[%s867 + $0x1] sm:$0x1]
      %v870 = vld [vmem:[%s867 + $0x2] sm:$0x1]
      %v871 = vld [vmem:[%s867 + $0x3] sm:$0x1]
      %v872 = vld [vmem:[%s867 + $0x4] sm:$0x1]
      %v873 = vld [vmem:[%s867 + $0x5] sm:$0x1]
      %v874 = vld [vmem:[%s867 + $0x6] sm:$0x1]
      %v875 = vld [vmem:[%s867 + $0x7] sm:$0x1]
      %v884 = vlaneseq
      %v885 = vshrl.u32 %v884, 7
      %v886 = vsub.s32 0, %v885
      %v887 = vrot.slane %v868, %v886
      %v888 = vlaneseq
      %v889 = vshrl.u32 %v888, 7
      %v890 = vsub.s32 0, %v889
      %v891 = vrot.slane %v869, %v890
      %v892 = vlaneseq
      %v893 = vshrl.u32 %v892, 7
      %v894 = vsub.s32 0, %v893
      %v895 = vrot.slane %v870, %v894
      %v896 = vlaneseq
      %v897 = vshrl.u32 %v896, 7
      %v898 = vsub.s32 0, %v897
      %v899 = vrot.slane %v871, %v898
      %v900 = vlaneseq
      %v901 = vshrl.u32 %v900, 7
      %v902 = vsub.s32 0, %v901
      %v903 = vrot.slane %v872, %v902
      %v904 = vlaneseq
      %v905 = vshrl.u32 %v904, 7
      %v906 = vsub.s32 0, %v905
      %v907 = vrot.slane %v873, %v906
      %v908 = vlaneseq
      %v909 = vshrl.u32 %v908, 7
      %v910 = vsub.s32 0, %v909
      %v911 = vrot.slane %v874, %v910
      %v912 = vlaneseq
      %v913 = vshrl.u32 %v912, 7
      %v914 = vsub.s32 0, %v913
      %v915 = vrot.slane %v875, %v914
      %v924 = vmul.f32 %v887, %v224
      %v925 = vmul.f32 %v887, %v225
      %v926 = vmul.f32 %v891, %v224
      %v927 = vmul.f32 %v891, %v225
      %v928 = vmul.f32 %v895, %v224
      %v929 = vmul.f32 %v895, %v225
      %v930 = vmul.f32 %v899, %v224
      %v931 = vmul.f32 %v899, %v225
      %v932 = vmul.f32 %v903, %v224
      %v933 = vmul.f32 %v903, %v225
      %v934 = vmul.f32 %v907, %v224
      %v935 = vmul.f32 %v907, %v225
      %v936 = vmul.f32 %v911, %v224
      %v937 = vmul.f32 %v911, %v225
      %v938 = vmul.f32 %v915, %v224
      %v939 = vmul.f32 %v915, %v225
      %v940 = vadd.f32 %v851, %v924
      %v941 = vadd.f32 %v852, %v925
      %v942 = vadd.f32 %v853, %v926
      %v943 = vadd.f32 %v854, %v927
      %v944 = vadd.f32 %v855, %v928
      %v945 = vadd.f32 %v856, %v929
      %v946 = vadd.f32 %v857, %v930
      %v947 = vadd.f32 %v858, %v931
      %v948 = vadd.f32 %v859, %v932
      %v949 = vadd.f32 %v860, %v933
      %v950 = vadd.f32 %v861, %v934
      %v951 = vadd.f32 %v862, %v935
      %v952 = vadd.f32 %v863, %v936
      %v953 = vadd.f32 %v864, %v937
      %v954 = vadd.f32 %v865, %v938
      %v955 = vadd.f32 %v866, %v939
      %s956 = scalar_lea.vmem %s1, 56
      %v957 = vld [vmem:[%s956] sm:$0x1]
      %v958 = vld [vmem:[%s956 + $0x1] sm:$0x1]
      %v959 = vld [vmem:[%s956 + $0x2] sm:$0x1]
      %v960 = vld [vmem:[%s956 + $0x3] sm:$0x1]
      %v961 = vld [vmem:[%s956 + $0x4] sm:$0x1]
      %v962 = vld [vmem:[%s956 + $0x5] sm:$0x1]
      %v963 = vld [vmem:[%s956 + $0x6] sm:$0x1]
      %v964 = vld [vmem:[%s956 + $0x7] sm:$0x1]
      %v973 = vlaneseq
      %v974 = vshrl.u32 %v973, 7
      %v975 = vsub.s32 0, %v974
      %v976 = vrot.slane %v957, %v975
      %v977 = vlaneseq
      %v978 = vshrl.u32 %v977, 7
      %v979 = vsub.s32 0, %v978
      %v980 = vrot.slane %v958, %v979
      %v981 = vlaneseq
      %v982 = vshrl.u32 %v981, 7
      %v983 = vsub.s32 0, %v982
      %v984 = vrot.slane %v959, %v983
      %v985 = vlaneseq
      %v986 = vshrl.u32 %v985, 7
      %v987 = vsub.s32 0, %v986
      %v988 = vrot.slane %v960, %v987
      %v989 = vlaneseq
      %v990 = vshrl.u32 %v989, 7
      %v991 = vsub.s32 0, %v990
      %v992 = vrot.slane %v961, %v991
      %v993 = vlaneseq
      %v994 = vshrl.u32 %v993, 7
      %v995 = vsub.s32 0, %v994
      %v996 = vrot.slane %v962, %v995
      %v997 = vlaneseq
      %v998 = vshrl.u32 %v997, 7
      %v999 = vsub.s32 0, %v998
      %v1000 = vrot.slane %v963, %v999
      %v1001 = vlaneseq
      %v1002 = vshrl.u32 %v1001, 7
      %v1003 = vsub.s32 0, %v1002
      %v1004 = vrot.slane %v964, %v1003
      %v1013 = vmul.f32 %v976, %v227
      %v1014 = vmul.f32 %v976, %v228
      %v1015 = vmul.f32 %v980, %v227
      %v1016 = vmul.f32 %v980, %v228
      %v1017 = vmul.f32 %v984, %v227
      %v1018 = vmul.f32 %v984, %v228
      %v1019 = vmul.f32 %v988, %v227
      %v1020 = vmul.f32 %v988, %v228
      %v1021 = vmul.f32 %v992, %v227
      %v1022 = vmul.f32 %v992, %v228
      %v1023 = vmul.f32 %v996, %v227
      %v1024 = vmul.f32 %v996, %v228
      %v1025 = vmul.f32 %v1000, %v227
      %v1026 = vmul.f32 %v1000, %v228
      %v1027 = vmul.f32 %v1004, %v227
      %v1028 = vmul.f32 %v1004, %v228
      %v1029 = vadd.f32 %v940, %v1013
      %v1030 = vadd.f32 %v941, %v1014
      %v1031 = vadd.f32 %v942, %v1015
      %v1032 = vadd.f32 %v943, %v1016
      %v1033 = vadd.f32 %v944, %v1017
      %v1034 = vadd.f32 %v945, %v1018
      %v1035 = vadd.f32 %v946, %v1019
      %v1036 = vadd.f32 %v947, %v1020
      %v1037 = vadd.f32 %v948, %v1021
      %v1038 = vadd.f32 %v949, %v1022
      %v1039 = vadd.f32 %v950, %v1023
      %v1040 = vadd.f32 %v951, %v1024
      %v1041 = vadd.f32 %v952, %v1025
      %v1042 = vadd.f32 %v953, %v1026
      %v1043 = vadd.f32 %v954, %v1027
      %v1044 = vadd.f32 %v955, %v1028
      %v1045 = vmax.f32 %v1029, 0.0
      %v1046 = vmax.f32 %v1030, 0.0
      %v1047 = vmax.f32 %v1031, 0.0
      %v1048 = vmax.f32 %v1032, 0.0
      %v1049 = vmax.f32 %v1033, 0.0
      %v1050 = vmax.f32 %v1034, 0.0
      %v1051 = vmax.f32 %v1035, 0.0
      %v1052 = vmax.f32 %v1036, 0.0
      %v1053 = vmax.f32 %v1037, 0.0
      %v1054 = vmax.f32 %v1038, 0.0
      %v1055 = vmax.f32 %v1039, 0.0
      %v1056 = vmax.f32 %v1040, 0.0
      %v1057 = vmax.f32 %v1041, 0.0
      %v1058 = vmax.f32 %v1042, 0.0
      %v1059 = vmax.f32 %v1043, 0.0
      %v1060 = vmax.f32 %v1044, 0.0
      %1077 = vrot.lane.b32.xlu0 %v1045, 32
      %v1078 = vpop.permute.xlu0 %1077
      %1079 = vrot.lane.b32.xlu0 %v1046, 32
      %v1080 = vpop.permute.xlu0 %1079
      %1081 = vrot.lane.b32.xlu0 %v1047, 32
      %v1082 = vpop.permute.xlu0 %1081
      %1083 = vrot.lane.b32.xlu0 %v1048, 32
      %v1084 = vpop.permute.xlu0 %1083
      %1085 = vrot.lane.b32.xlu0 %v1049, 32
      %v1086 = vpop.permute.xlu0 %1085
      %1087 = vrot.lane.b32.xlu0 %v1050, 32
      %v1088 = vpop.permute.xlu0 %1087
      %1089 = vrot.lane.b32.xlu0 %v1051, 32
      %v1090 = vpop.permute.xlu0 %1089
      %1091 = vrot.lane.b32.xlu0 %v1052, 32
      %v1092 = vpop.permute.xlu0 %1091
      %1093 = vrot.lane.b32.xlu0 %v1053, 32
      %v1094 = vpop.permute.xlu0 %1093
      %1095 = vrot.lane.b32.xlu0 %v1054, 32
      %v1096 = vpop.permute.xlu0 %1095
      %1097 = vrot.lane.b32.xlu0 %v1055, 32
      %v1098 = vpop.permute.xlu0 %1097
      %1099 = vrot.lane.b32.xlu0 %v1056, 32
      %v1100 = vpop.permute.xlu0 %1099
      %1101 = vrot.lane.b32.xlu0 %v1057, 32
      %v1102 = vpop.permute.xlu0 %1101
      %1103 = vrot.lane.b32.xlu0 %v1058, 32
      %v1104 = vpop.permute.xlu0 %1103
      %1105 = vrot.lane.b32.xlu0 %v1059, 32
      %v1106 = vpop.permute.xlu0 %1105
      %1107 = vrot.lane.b32.xlu0 %v1060, 32
      %v1108 = vpop.permute.xlu0 %1107
      %vm1125 = vcmask 523520
      %1126 = vst.msk [vmem:[%s208] sm:$0xff] %vm1125, %v1078
      %1127 = vst.msk [vmem:[%s208 + $0x8] sm:$0xff] %vm1125, %v1080
      %1128 = vst.msk [vmem:[%s208 + $0x10] sm:$0xff] %vm1125, %v1082
      %1129 = vst.msk [vmem:[%s208 + $0x18] sm:$0xff] %vm1125, %v1084
      %1130 = vst.msk [vmem:[%s208 + $0x20] sm:$0xff] %vm1125, %v1086
      %1131 = vst.msk [vmem:[%s208 + $0x28] sm:$0xff] %vm1125, %v1088
      %1132 = vst.msk [vmem:[%s208 + $0x30] sm:$0xff] %vm1125, %v1090
      %1133 = vst.msk [vmem:[%s208 + $0x38] sm:$0xff] %vm1125, %v1092
      %1134 = vst.msk [vmem:[%s208 + $0x40] sm:$0xff] %vm1125, %v1094
      %1135 = vst.msk [vmem:[%s208 + $0x48] sm:$0xff] %vm1125, %v1096
      %1136 = vst.msk [vmem:[%s208 + $0x50] sm:$0xff] %vm1125, %v1098
      %1137 = vst.msk [vmem:[%s208 + $0x58] sm:$0xff] %vm1125, %v1100
      %1138 = vst.msk [vmem:[%s208 + $0x60] sm:$0xff] %vm1125, %v1102
      %1139 = vst.msk [vmem:[%s208 + $0x68] sm:$0xff] %vm1125, %v1104
      %1140 = vst.msk [vmem:[%s208 + $0x70] sm:$0xff] %vm1125, %v1106
      %1141 = vst.msk [vmem:[%s208 + $0x78] sm:$0xff] %vm1125, %v1108
      %s1142 = smul.u32 2, %s19
      %p1143 = scmp.lt.s32.totalorder %s18, 1
      %s1144 = scalar_select %p1143, %s18, 1
      %p1145 = scmp.lt.s32.totalorder %s1142, 1
      %s1146 = scalar_select %p1145, %s1142, 1
      %s1147 = smul.addr %s1144, 16
      %s1148 = sadd.s32 %s1146, %s1147
      %s1149 = smul.addr %s1148, 8
      %s1150 = scalar_lea.vmem %s3, %s1149
      // Predicated region
      $region33: #{up_forward.1} parent=31 // pred_check
        %p1151 = pneg %p116
      $region34: #{up_forward.1} parent=31 // pred_check_branch
        %1153 = sbr.rel (%p1151) target = $region36
      $region35: #{up_forward.1} parent=31 // pred_region
        %s1154 = smul.u32 2, %s19
      $region36: #{up_forward.1} parent=31 // pred_fallthru
        _
    $region32: #{up_forward.1} parent=5 // pred_fallthru
      _
    %p1155 = scmp.le.s32.totalorder 2, %s9
    // Predicated region
    $region37: #{up_forward.1} parent=5 // pred_check
      %p1156 = pneg %p1155
    $region38: #{up_forward.1} parent=5 // pred_check_branch
      %1158 = sbr.rel (%p1156) target = $region40
    $region39: #{up_forward.1} parent=5 // pred_region
      %s1159 = ssub.s32 %s9, 2
      // Predicated region
      $region41: #{up_forward.1} parent=39 // pred_check
        %p1160 = pneg %p122
      $region42: #{up_forward.1} parent=39 // pred_check_branch
        %1162 = sbr.rel (%p1160) target = $region44
      $region43: #{up_forward.1} parent=39 // pred_region
        %s1163 = smul.u32 2, %s21
        %p1164 = scmp.lt.s32.totalorder %s20, 1
        %s1165 = scalar_select %p1164, %s20, 1
        %p1166 = scmp.lt.s32.totalorder %s1163, 1
        %s1167 = scalar_select %p1166, %s1163, 1
        %s1168 = smul.addr %s1165, 16
        %s1169 = sadd.s32 %s1167, %s1168
        %s1170 = smul.addr %s1169, 8
        %s1171 = scalar_lea.vmem %s3, %s1170
      $region44: #{up_forward.1} parent=39 // pred_fallthru
        _
    $region40: #{up_forward.1} parent=5 // pred_fallthru
      _
  $region6: #{up_forward.1} parent=0 // loop_footer
    %s13 = sadd.s32 1, %s9
  $region7: #{up_forward.1} parent=0 // loop_footer_branch
    %8 = sbr.rel target = $region3
  $region8: #{up_forward.1} parent=0 // loop_exit
    _

</llo_original>
